<compile_context>
chip_gen: v6e
topology: v6e:2x2x1
jax: 0.10.0
libtpu: 0.0.40
codegen_flags: <defaults>
</compile_context>

<pallas_src>
import functools

import jax
import jax.numpy as jnp
from jax import lax
from jax.experimental import pallas as pl
from jax.experimental.pallas import tpu as pltpu

_LANE = 128
_SUBLANE = 8


def _ce_kernel(x_ref, y_ref, wy_ref, loss_ref):
    # x_ref: (BN, C) logits tile, y_ref: (BN, 1) int32 targets,
    # wy_ref: (BN, 1) f32 per-sample class weights, loss_ref: (BN, 1) f32 out.
    x = x_ref[...].astype(jnp.float32)               # upcast per tile (bf16 stays narrow over HBM)
    y = y_ref[...]                                   # (BN, 1) int32
    wy = wy_ref[...]                                 # (BN, 1) f32
    bn, c = x.shape

    # numerically-stable log-softmax denominator (2 cross-lane reductions + EUP exp)
    m = jnp.max(x, axis=-1, keepdims=True)                                  # (BN, 1)
    lse = jnp.log(jnp.sum(jnp.exp(x - m), axis=-1, keepdims=True)) + m      # (BN, 1)

    # gather-free target-logit selection via one-hot masked reduction
    col = lax.broadcasted_iota(jnp.int32, (bn, c), 1)
    tgt = jnp.sum(jnp.where(col == y, x, 0.0), axis=-1, keepdims=True)      # (BN, 1)

    # -w[y] * log_softmax(x)[y]; rows with y == ignore_index (or out of range)
    # have wy == 0 and an all-false one-hot, so they contribute exactly 0.
    loss_ref[...] = wy * (lse - tgt)


def _bytes_per_row(c, itemsize):
    """Conservative VMEM bytes per tile row.

    Counts the double-buffered native logits tile, ~3 full-tile f32
    elementwise temporaries (upcast, x-m, exp), and the three (BN, 1) side
    buffers (targets / weights / loss) which each pad to a (BN, 128)-lane
    native tile and are double-buffered by the pipeline.
    """
    logits = 2 * c * itemsize
    f32_temps = 3 * c * 4
    side = 3 * 2 * _LANE * 4
    return logits + f32_temps + side


def _vmem_budget_bytes():
    """Generation-aware VMEM budget for tile sizing (keep ~half as headroom)."""
    try:
        cap = int(pltpu.get_tpu_info().vmem_capacity_bytes)
    except Exception:
        cap = 64 << 20            # assume the smallest (v7x per-TC) if unknown
    return min(cap // 2, 48 << 20)


def _pick_block_n(n, c, itemsize, vmem_budget):
    """Row-tile size: ~4 MiB logits tiles (amortizes the ~0.35 us/step overhead
    to ~85-90% of HBM roofline), capped by the corrected VMEM budget, a
    multiple of 8 sublanes, and >=4 grid steps when N allows it (>=2 per v7x
    TensorCore so BlockSpec double-buffering overlaps DMA with compute)."""
    target_tile_bytes = 4 << 20
    rows = max(_SUBLANE, target_tile_bytes // max(1, c * itemsize))
    rows = min(rows, max(_SUBLANE, vmem_budget // _bytes_per_row(c, itemsize)))
    rows = min(rows, 4096)
    if n > 4 * _SUBLANE:
        q = -(-n // 4)                                    # ceil(n / 4)
        rows = min(rows, -(-q // _SUBLANE) * _SUBLANE)    # round up to 8 sublanes
    rows = max(_SUBLANE, (rows // _SUBLANE) * _SUBLANE)
    return n if n <= rows else rows


@functools.partial(jax.jit, static_argnames=("reduction", "block_n", "ignore_index"))
def cross_entropy_loss(x, y, weight=None, reduction="mean", block_n=None,
                       ignore_index=-100):
    """x: (N, C) float logits, y: (N,) int class indices, weight: optional (C,)."""
    n, c = x.shape
    itemsize = x.dtype.itemsize
    vmem_budget = _vmem_budget_bytes()
    if block_n is None:
        block_n = _pick_block_n(n, c, itemsize, vmem_budget)
    grid = (pl.cdiv(n, block_n),)

    y = y.astype(jnp.int32)
    valid = (y != ignore_index) & (y >= 0) & (y < c)
    y_safe = jnp.where(valid, y, 0)
    if weight is None:
        wy = valid.astype(jnp.float32)
    else:
        wy = jnp.where(valid, weight.astype(jnp.float32)[y_safe], 0.0)

    y2d = y.reshape(n, 1)
    wy2d = wy.reshape(n, 1)

    params = {"dimension_semantics": ("parallel",)}
    # Corrected VMEM estimate: native double-buffered logits + f32 temporaries
    # + 128-lane-padded (block_n, 1) side buffers + slack for Mosaic scratch.
    vmem_need = block_n * _bytes_per_row(c, itemsize) + (1 << 20)
    if vmem_need > 12 * 1024 * 1024:   # v5e's default scoped limit is only 16 MiB
        params["vmem_limit_bytes"] = int(
            min(max(vmem_need + vmem_need // 4, 32 << 20), 48 << 20))

    loss2d = pl.pallas_call(
        _ce_kernel,
        out_shape=jax.ShapeDtypeStruct((n, 1), jnp.float32),
        grid_spec=pltpu.PrefetchScalarGridSpec(
            num_scalar_prefetch=0,
            grid=grid,
            in_specs=[
                pl.BlockSpec((block_n, c), lambda i: (i, 0)),   # logits tile
                pl.BlockSpec((block_n, 1), lambda i: (i, 0)),   # targets
                pl.BlockSpec((block_n, 1), lambda i: (i, 0)),   # per-sample weight
            ],
            out_specs=pl.BlockSpec((block_n, 1), lambda i: (i, 0)),
        ),
        compiler_params=pltpu.CompilerParams(**params),
    )(x, y2d, wy2d)

    loss = loss2d.reshape(n)
    if reduction == "none":
        return loss
    if reduction == "sum":
        return jnp.sum(loss)
    # 'mean' — PyTorch divides by the sum of per-sample class weights
    # (== number of non-ignored samples when weight is None).
    return jnp.sum(loss) / jnp.sum(wy)


def _reference(x, y, weight, reduction, ignore_index=-100):
    # pure-JAX reference of F.cross_entropy (class-index targets)
    logp = jax.nn.log_softmax(x.astype(jnp.float32), axis=-1)
    valid = y != ignore_index
    y_safe = jnp.where(valid, y, 0)
    w = jnp.ones((x.shape[-1],), jnp.float32) if weight is None else weight.astype(jnp.float32)
    wy = jnp.where(valid, w[y_safe], 0.0)
    per = -wy * jnp.take_along_axis(logp, y_safe[:, None], axis=-1)[:, 0]
    per = jnp.where(valid, per, 0.0)
    if reduction == "none":
        return per
    if reduction == "sum":
        return jnp.sum(per)
    return jnp.sum(per) / jnp.sum(wy)


if __name__ == "__main__":
    key = jax.random.PRNGKey(0)
    kx, ky, kx2, ky2, kx3, ky3 = jax.random.split(key, 6)

    ok = True

    # Test 1: weighted, all reductions, explicit small block -> 4 grid steps.
    N, C = 64, 128
    x = jax.random.normal(kx, (N, C), dtype=jnp.float32)
    y = jax.random.randint(ky, (N,), 0, C, dtype=jnp.int32)
    weight = jnp.linspace(0.5, 1.5, C, dtype=jnp.float32)
    for reduction in ("mean", "sum", "none"):
        out = jax.block_until_ready(
            cross_entropy_loss(x, y, weight=weight, reduction=reduction, block_n=16))
        ref = _reference(x, y, weight, reduction)
        ok &= bool(jnp.allclose(out, ref, atol=1e-4, rtol=1e-4))

    # Test 2: unweighted, N not divisible by the auto-chosen block (tail block
    # masked by Pallas), plus one ignored target (PyTorch default -100).
    N2 = 37
    x2 = jax.random.normal(kx2, (N2, C), dtype=jnp.float32)
    y2 = jax.random.randint(ky2, (N2,), 0, C, dtype=jnp.int32)
    y2 = y2.at[3].set(-100)
    for reduction in ("mean", "none"):
        out = jax.block_until_ready(cross_entropy_loss(x2, y2, reduction=reduction))
        ref = _reference(x2, y2, None, reduction)
        ok &= bool(jnp.allclose(out, ref, atol=1e-4, rtol=1e-4))

    # Test 3: bf16 logits travel narrow over HBM, upcast per tile in the kernel.
    N3, C3 = 48, 256
    x3 = jax.random.normal(kx3, (N3, C3), dtype=jnp.float32).astype(jnp.bfloat16)
    y3 = jax.random.randint(ky3, (N3,), 0, C3, dtype=jnp.int32)
    out = jax.block_until_ready(cross_entropy_loss(x3, y3, reduction="mean"))
    ref = _reference(x3, y3, None, "mean")
    ok &= bool(jnp.allclose(out, ref, atol=1e-3, rtol=1e-3))

    print("KERNEL_OK" if ok else "KERNEL_MISMATCH")
</pallas_src>

<mosaic_0001>
module attributes {stable_mosaic.version = 11 : i64} {
  func.func @_ce_kernel(%arg0: i32, %arg1: memref<16x128xf32, #tpu.memory_space<vmem>>, %arg2: memref<16x1xi32, #tpu.memory_space<vmem>>, %arg3: memref<16x1xf32, #tpu.memory_space<vmem>>, %arg4: memref<16x1xf32, #tpu.memory_space<vmem>>) attributes {dimension_semantics = [#tpu.dimension_semantics<parallel>], iteration_bounds = array<i64: 4>, scalar_prefetch = 0 : i64, scratch_operands = 0 : i64, tpu.core_type = #tpu.core_type<tc>, window_params = [{transform_indices = @transform_0, window_bounds = array<i64: 16, 128>}, {transform_indices = @transform_1, window_bounds = array<i64: 16, 1>}, {transform_indices = @transform_2, window_bounds = array<i64: 16, 1>}, {transform_indices = @transform_3, window_bounds = array<i64: 16, 1>}]} {
    %c0 = arith.constant 0 : index
    %c0_0 = arith.constant 0 : index
    %0 = vector.load %arg1[%c0, %c0_0] : memref<16x128xf32, #tpu.memory_space<vmem>>, vector<16x128xf32>
    %c0_1 = arith.constant 0 : index
    %c0_2 = arith.constant 0 : index
    %1 = vector.load %arg2[%c0_1, %c0_2] : memref<16x1xi32, #tpu.memory_space<vmem>>, vector<16x1xi32>
    %c0_3 = arith.constant 0 : index
    %c0_4 = arith.constant 0 : index
    %2 = vector.load %arg3[%c0_3, %c0_4] : memref<16x1xf32, #tpu.memory_space<vmem>>, vector<16x1xf32>
    %cst = arith.constant dense<0xFF800000> : vector<16xf32>
    %3 = vector.multi_reduction <maximumf>, %0, %cst [1] : vector<16x128xf32> to vector<16xf32>
    %4 = vector.shape_cast %3 : vector<16xf32> to vector<16x1xf32>
    %5 = vector.broadcast %4 : vector<16x1xf32> to vector<16x128xf32>
    %6 = arith.subf %0, %5 : vector<16x128xf32>
    %7 = math.exp %6 : vector<16x128xf32>
    %cst_5 = arith.constant dense<0.000000e+00> : vector<16xf32>
    %8 = vector.multi_reduction <add>, %7, %cst_5 [1] : vector<16x128xf32> to vector<16xf32>
    %9 = vector.shape_cast %8 : vector<16xf32> to vector<16x1xf32>
    %10 = math.log %9 : vector<16x1xf32>
    %11 = arith.addf %10, %4 : vector<16x1xf32>
    %12 = tpu.iota {dimensions = array<i32: 1>} : vector<16x128xi32>
    %13 = vector.broadcast %1 : vector<16x1xi32> to vector<16x128xi32>
    %14 = arith.cmpi eq, %12, %13 : vector<16x128xi32>
    %cst_6 = arith.constant 0.000000e+00 : f32
    %15 = vector.broadcast %cst_6 : f32 to vector<16x128xf32>
    %16 = arith.select %14, %0, %15 : vector<16x128xi1>, vector<16x128xf32>
    %cst_7 = arith.constant dense<0.000000e+00> : vector<16xf32>
    %17 = vector.multi_reduction <add>, %16, %cst_7 [1] : vector<16x128xf32> to vector<16xf32>
    %18 = vector.shape_cast %17 : vector<16xf32> to vector<16x1xf32>
    %19 = arith.subf %11, %18 : vector<16x1xf32>
    %20 = arith.mulf %2, %19 : vector<16x1xf32>
    %c0_8 = arith.constant 0 : index
    %c0_9 = arith.constant 0 : index
    %21 = vector.load %arg4[%c0_8, %c0_9] : memref<16x1xf32, #tpu.memory_space<vmem>>, vector<16x1xf32>
    tpu.vector_store %arg4[%c0_8, %c0_9], %20 {strides = array<i32>} : memref<16x1xf32, #tpu.memory_space<vmem>>, vector<16x1xf32>,
    return
  }
  func.func @transform_0(%arg0: i32) -> (i32, i32) {
    %c0_i32 = arith.constant 0 : i32
    %c0_i32_0 = arith.constant 0 : i32
    return %arg0, %c0_i32 : i32, i32
  }
  func.func @transform_1(%arg0: i32) -> (i32, i32) {
    %c0_i32 = arith.constant 0 : i32
    %c0_i32_0 = arith.constant 0 : i32
    return %arg0, %c0_i32 : i32, i32
  }
  func.func @transform_2(%arg0: i32) -> (i32, i32) {
    %c0_i32 = arith.constant 0 : i32
    %c0_i32_0 = arith.constant 0 : i32
    return %arg0, %c0_i32 : i32, i32
  }
  func.func @transform_3(%arg0: i32) -> (i32, i32) {
    %c0_i32 = arith.constant 0 : i32
    %c0_i32_0 = arith.constant 0 : i32
    return %arg0, %c0_i32 : i32, i32
  }
}

</mosaic_0001>

<llo_original>
// kernel: cross_entropy_loss.1
$region0: #{cross_entropy_loss.1}
  #allocation0 [shape = 'u32[]', space=smem, size = 0x4, offset = 0x4, fixed_abs, tag = 'smem constant byte address 0x4 - core index']
  #allocation1 [shape = 'u32[144,128]{1,0:T(1,128)}', space=vmem, size = 0x12000, scoped, tag = 'internal scratch']
  %s0 = inlined_call_operand.vmem [shape: f32[64,128], index: 0, kind: input, shape index: {}]
  %s1 = inlined_call_operand.vmem [shape: s32[64,1], index: 1, kind: input, shape index: {}]
  %s2 = inlined_call_operand.vmem [shape: f32[64,1], index: 2, kind: input, shape index: {}]
  %s3 = inlined_call_operand.vmem [shape: f32[64,1], index: 3, kind: output, shape index: {}]
  %s4 = sld [smem:[#allocation0]]
  $region45: #{cross_entropy_loss.1} parent=0
    _
  %s6 = ssub.s32 1, %s4
  %s7 = scalar_select 0, %s6, %s4
  loop: start=0, step=1, limit=6
  $region2: #{cross_entropy_loss.1} parent=0 // loop_pre_header
    _
  $region3: #{cross_entropy_loss.1} parent=0 // loop_header
    %s9 = sphi 0, %s13
    %p10 = scmp.ge.s32.totalorder %s9, 6
    %s19 = sphi 0, %s21
    %s22 = sphi 0, %s19
    %s23 = sphi 0, %s22
    %s39 = sphi 0, %s23
    %s45 = sphi 0, %s47
    %s48 = sphi 0, %s45
    %s49 = sphi 0, %s48
    %s65 = sphi 0, %s49
    %s71 = sphi 0, %s73
    %s74 = sphi 0, %s71
    %s75 = sphi 0, %s74
    %s91 = sphi 0, %s75
    %s97 = sphi 0, %s99
    %s100 = sphi 0, %s97
    %s101 = sphi 0, %s100
    %s117 = sphi 0, %s101
  $region4: #{cross_entropy_loss.1} parent=0 // loop_header_branch
    %12 = sbr.rel (%p10) target = $region8
  $region5: #{cross_entropy_loss.1} parent=0 // loop_body
    %s14 = ssub.s32 %s9, 1
    %s15 = ssub.s32 %s9, 2
    %s16 = sadd.s32 %s9, 1
    %s17 = ssub.s32 %s9, %s16
    %p18 = scmp.eq.s32.totalorder %s17, 0
    %s20 = sadd.s32 %s19, 1
    %s21 = scalar_select %p18, %s19, %s20
    %p24 = pneg %p18
    %p25 = scmp.eq.s32.totalorder %s9, 3
    %p26 = por %p24, %p25
    %p27 = scmp.ne.s32.totalorder %s19, %s22
    %p28 = scmp.eq.s32.totalorder %s9, 0
    %p29 = por %p27, %p28
    %p30 = scmp.ne.s32.totalorder %s19, %s22
    %p31 = scmp.eq.s32.totalorder %s14, 3
    %p32 = por %p30, %p31
    %p33 = scmp.ne.s32.totalorder %s22, %s23
    %p34 = scmp.eq.s32.totalorder %s14, 0
    %p35 = por %p33, %p34
    %p36 = scmp.ne.s32.totalorder %s22, %s23
    %p37 = scmp.eq.s32.totalorder %s15, 3
    %p38 = por %p36, %p37
    %p40 = scmp.ne.s32.totalorder %s23, %s39
    %p41 = scmp.eq.s32.totalorder %s15, 0
    %p42 = por %p40, %p41
    %s43 = ssub.s32 %s9, %s16
    %p44 = scmp.eq.s32.totalorder %s43, 0
    %s46 = sadd.s32 %s45, 1
    %s47 = scalar_select %p44, %s45, %s46
    %p50 = pneg %p44
    %p51 = scmp.eq.s32.totalorder %s9, 3
    %p52 = por %p50, %p51
    %p53 = scmp.ne.s32.totalorder %s45, %s48
    %p54 = scmp.eq.s32.totalorder %s9, 0
    %p55 = por %p53, %p54
    %p56 = scmp.ne.s32.totalorder %s45, %s48
    %p57 = scmp.eq.s32.totalorder %s14, 3
    %p58 = por %p56, %p57
    %p59 = scmp.ne.s32.totalorder %s48, %s49
    %p60 = scmp.eq.s32.totalorder %s14, 0
    %p61 = por %p59, %p60
    %p62 = scmp.ne.s32.totalorder %s48, %s49
    %p63 = scmp.eq.s32.totalorder %s15, 3
    %p64 = por %p62, %p63
    %p66 = scmp.ne.s32.totalorder %s49, %s65
    %p67 = scmp.eq.s32.totalorder %s15, 0
    %p68 = por %p66, %p67
    %s69 = ssub.s32 %s9, %s16
    %p70 = scmp.eq.s32.totalorder %s69, 0
    %s72 = sadd.s32 %s71, 1
    %s73 = scalar_select %p70, %s71, %s72
    %p76 = pneg %p70
    %p77 = scmp.eq.s32.totalorder %s9, 3
    %p78 = por %p76, %p77
    %p79 = scmp.ne.s32.totalorder %s71, %s74
    %p80 = scmp.eq.s32.totalorder %s9, 0
    %p81 = por %p79, %p80
    %p82 = scmp.ne.s32.totalorder %s71, %s74
    %p83 = scmp.eq.s32.totalorder %s14, 3
    %p84 = por %p82, %p83
    %p85 = scmp.ne.s32.totalorder %s74, %s75
    %p86 = scmp.eq.s32.totalorder %s14, 0
    %p87 = por %p85, %p86
    %p88 = scmp.ne.s32.totalorder %s74, %s75
    %p89 = scmp.eq.s32.totalorder %s15, 3
    %p90 = por %p88, %p89
    %p92 = scmp.ne.s32.totalorder %s75, %s91
    %p93 = scmp.eq.s32.totalorder %s15, 0
    %p94 = por %p92, %p93
    %s95 = ssub.s32 %s9, %s16
    %p96 = scmp.eq.s32.totalorder %s95, 0
    %s98 = sadd.s32 %s97, 1
    %s99 = scalar_select %p96, %s97, %s98
    %p102 = pneg %p96
    %p103 = scmp.eq.s32.totalorder %s9, 3
    %p104 = por %p102, %p103
    %p105 = scmp.ne.s32.totalorder %s97, %s100
    %p106 = scmp.eq.s32.totalorder %s9, 0
    %p107 = por %p105, %p106
    %p108 = scmp.ne.s32.totalorder %s97, %s100
    %p109 = scmp.eq.s32.totalorder %s14, 3
    %p110 = por %p108, %p109
    %p111 = scmp.ne.s32.totalorder %s100, %s101
    %p112 = scmp.eq.s32.totalorder %s14, 0
    %p113 = por %p111, %p112
    %p114 = scmp.ne.s32.totalorder %s100, %s101
    %p115 = scmp.eq.s32.totalorder %s15, 3
    %p116 = por %p114, %p115
    %p118 = scmp.ne.s32.totalorder %s101, %s117
    %p119 = scmp.eq.s32.totalorder %s15, 0
    %p120 = por %p118, %p119
    %p121 = scmp.le.s32.totalorder 1, %s9
    %p122 = scmp.lt.s32.totalorder %s9, 5
    %p123 = pnand %p121, %p122
    %p124 = pneg %p123
    // Predicated region
    $region9: #{cross_entropy_loss.1} parent=5 // pred_check
      _
    $region10: #{cross_entropy_loss.1} parent=5 // pred_check_branch
      %126 = sbr.rel (%p123) target = $region12
    $region11: #{cross_entropy_loss.1} parent=5 // pred_region
      %s127 = ssub.s32 %s9, 1
    $region12: #{cross_entropy_loss.1} parent=5 // pred_fallthru
      _
    %p128 = scmp.lt.s32.totalorder %s9, 4
    // Predicated region
    $region13: #{cross_entropy_loss.1} parent=5 // pred_check
      %p129 = pneg %p128
    $region14: #{cross_entropy_loss.1} parent=5 // pred_check_branch
      %131 = sbr.rel (%p129) target = $region16
    $region15: #{cross_entropy_loss.1} parent=5 // pred_region
      // Predicated region
      $region17: #{cross_entropy_loss.1} parent=15 // pred_check
        %p132 = pneg %p29
      $region18: #{cross_entropy_loss.1} parent=15 // pred_check_branch
        %134 = sbr.rel (%p132) target = $region20
      $region19: #{cross_entropy_loss.1} parent=15 // pred_region
        %s135 = smul.u32 2, %s9
        %p136 = scmp.lt.s32.totalorder %s135, 7
        %s137 = scalar_select %p136, %s135, 7
        %s138 = smul.addr %s137, 8
        %s139 = scalar_lea.vmem %s0, %s138
        %s140 = smul.u32 2, %s9
      $region20: #{cross_entropy_loss.1} parent=15 // pred_fallthru
        _
      // Predicated region
      $region21: #{cross_entropy_loss.1} parent=15 // pred_check
        %p141 = pneg %p55
      $region22: #{cross_entropy_loss.1} parent=15 // pred_check_branch
        %143 = sbr.rel (%p141) target = $region24
      $region23: #{cross_entropy_loss.1} parent=15 // pred_region
        %s144 = smul.u32 2, %s9
        %p145 = scmp.lt.s32.totalorder %s144, 7
        %s146 = scalar_select %p145, %s144, 7
        %s147 = smul.addr %s146, 8
        %s148 = scalar_lea.vmem %s1, %s147
        %s149 = smul.u32 2, %s9
      $region24: #{cross_entropy_loss.1} parent=15 // pred_fallthru
        _
      // Predicated region
      $region25: #{cross_entropy_loss.1} parent=15 // pred_check
        %p150 = pneg %p81
      $region26: #{cross_entropy_loss.1} parent=15 // pred_check_branch
        %152 = sbr.rel (%p150) target = $region28
      $region27: #{cross_entropy_loss.1} parent=15 // pred_region
        %s153 = smul.u32 2, %s9
        %p154 = scmp.lt.s32.totalorder %s153, 7
        %s155 = scalar_select %p154, %s153, 7
        %s156 = smul.addr %s155, 8
        %s157 = scalar_lea.vmem %s2, %s156
        %s158 = smul.u32 2, %s9
      $region28: #{cross_entropy_loss.1} parent=15 // pred_fallthru
        _
    $region16: #{cross_entropy_loss.1} parent=5 // pred_fallthru
      _
    %p159 = scmp.le.s32.totalorder 1, %s9
    %p160 = scmp.lt.s32.totalorder %s9, 5
    %p161 = pnand %p159, %p160
    %p162 = pneg %p161
    // Predicated region
    $region29: #{cross_entropy_loss.1} parent=5 // pred_check
      _
    $region30: #{cross_entropy_loss.1} parent=5 // pred_check_branch
      %164 = sbr.rel (%p161) target = $region32
    $region31: #{cross_entropy_loss.1} parent=5 // pred_region
      %s165 = ssub.s32 %s9, 1
      %s166 = smul.u32 2, %s14
      %p167 = scmp.lt.s32.totalorder %s166, 7
      %s168 = scalar_select %p167, %s166, 7
      %s169 = smul.addr %s168, 8
      %s170 = scalar_lea.vmem %s0, %s169
      %p171 = pneg %p35
      %p172 = pneg %p32
      %s173 = smul.u32 2, %s14
      %p174 = scmp.lt.s32.totalorder %s173, 7
      %s175 = scalar_select %p174, %s173, 7
      %s176 = smul.addr %s175, 8
      %s177 = scalar_lea.vmem %s1, %s176
      %p178 = pneg %p61
      %p179 = pneg %p58
      %s180 = smul.u32 2, %s14
      %p181 = scmp.lt.s32.totalorder %s180, 7
      %s182 = scalar_select %p181, %s180, 7
      %s183 = smul.addr %s182, 8
      %s184 = scalar_lea.vmem %s2, %s183
      %p185 = pneg %p87
      %p186 = pneg %p84
      %p187 = pneg %p113
      %p188 = pneg %p110
      %s189 = smul.u32 2, %s14
      %p190 = scmp.lt.s32.totalorder %s189, 7
      %s191 = scalar_select %p190, %s189, 7
      %s192 = smul.addr %s191, 8
      %s193 = scalar_lea.vmem %s3, %s192
      %s194 = smul.u32 2, %s14
      %p195 = scmp.lt.s32.totalorder %s194, 7
      %s196 = scalar_select %p195, %s194, 7
      %s197 = smul.addr %s196, 8
      %s198 = scalar_lea.vmem %s0, %s197
      %s199 = smul.u32 2, %s14
      %s200 = smul.u32 2, %s14
      %p201 = scmp.lt.s32.totalorder %s200, 7
      %s202 = scalar_select %p201, %s200, 7
      %s203 = smul.addr %s202, 8
      %s204 = scalar_lea.vmem %s1, %s203
      %s205 = smul.u32 2, %s14
      %s206 = smul.u32 2, %s14
      %p207 = scmp.lt.s32.totalorder %s206, 7
      %s208 = scalar_select %p207, %s206, 7
      %s209 = smul.addr %s208, 8
      %s210 = scalar_lea.vmem %s2, %s209
      %s211 = smul.u32 2, %s14
      %s212 = smul.u32 2, %s14
      %p213 = scmp.lt.s32.totalorder %s212, 7
      %s214 = scalar_select %p213, %s212, 7
      %s215 = smul.addr %s214, 8
      %s216 = scalar_lea.vmem %s3, %s215
      %s217 = smul.u32 2, %s14
      %v218 = vld [vmem:[%s198] sm:$0xff]
      %v219 = vld [vmem:[%s198 + $0x8] sm:$0xff]
      %v220 = vld [vmem:[%s204] sm:$0xff]
      %v221 = vld [vmem:[%s204 + $0x8] sm:$0xff]
      %v222 = vld [vmem:[%s210] sm:$0xff]
      %v223 = vld [vmem:[%s210 + $0x8] sm:$0xff]
      %224 = vmax.xlane.f32.xlu0 %v218
      %v225 = vpop.xlane.xlu0 %224
      %226 = vmax.xlane.f32.xlu0 %v219
      %v227 = vpop.xlane.xlu0 %226
      %v228 = vsub.f32 %v218, %v225
      %v229 = vsub.f32 %v219, %v227
      %v230 = vmul.f32 %v228, 1.442695
      %v231 = vpow.pop %v230
      %v232 = vmul.f32 %v229, 1.442695
      %v233 = vpow.pop %v232
      %234 = vadd.xlane.f32.xlu0 %v231
      %v235 = vpop.xlane.xlu0 %234
      %236 = vadd.xlane.f32.xlu0 %v233
      %v237 = vpop.xlane.xlu0 %236
      %v238 = vlog2.pop %v235
      %v239 = vmul.f32 %v238, 0.6931472
      %v240 = vlog2.pop %v237
      %v241 = vmul.f32 %v240, 0.6931472
      %v242 = vadd.f32 %v239, %v225
      %v243 = vadd.f32 %v241, %v227
      %v244 = vlaneseq
      %v245 = vand.u32 %v244, 127
      %246 = vset.pattern.permute.xlu0 0
      %247 = vperm.xlu0 %246, %v220
      %v248 = vpop.permute.xlu0 %247
      %249 = vset.pattern.permute.xlu0 0
      %250 = vperm.xlu0 %249, %v221
      %v251 = vpop.permute.xlu0 %250
      %vm252 = vcmp.eq.s32.totalorder %v245, %v248
      %vm253 = vcmp.eq.s32.totalorder %v245, %v251
      %v254 = vsel %vm252, %v218, 0.0
      %v255 = vsel %vm253, %v219, 0.0
      %256 = vadd.xlane.f32.xlu0 %v254
      %v257 = vpop.xlane.xlu0 %256
      %258 = vadd.xlane.f32.xlu0 %v255
      %v259 = vpop.xlane.xlu0 %258
      %v260 = vsub.f32 %v242, %v257
      %v261 = vsub.f32 %v243, %v259
      %v262 = vmul.f32 %v222, %v260
      %v263 = vmul.f32 %v223, %v261
      %vm264 = vcmask 7168
      %265 = vst.msk [vmem:[%s216] sm:$0xff] %vm264, %v262
      %266 = vst.msk [vmem:[%s216 + $0x8] sm:$0xff] %vm264, %v263
      %s267 = smul.u32 2, %s14
      %p268 = scmp.lt.s32.totalorder %s267, 7
      %s269 = scalar_select %p268, %s267, 7
      %s270 = smul.addr %s269, 8
      %s271 = scalar_lea.vmem %s3, %s270
      // Predicated region
      $region33: #{cross_entropy_loss.1} parent=31 // pred_check
        %p272 = pneg %p110
      $region34: #{cross_entropy_loss.1} parent=31 // pred_check_branch
        %274 = sbr.rel (%p272) target = $region36
      $region35: #{cross_entropy_loss.1} parent=31 // pred_region
        %s275 = smul.u32 2, %s14
      $region36: #{cross_entropy_loss.1} parent=31 // pred_fallthru
        _
    $region32: #{cross_entropy_loss.1} parent=5 // pred_fallthru
      _
    %p276 = scmp.le.s32.totalorder 2, %s9
    // Predicated region
    $region37: #{cross_entropy_loss.1} parent=5 // pred_check
      %p277 = pneg %p276
    $region38: #{cross_entropy_loss.1} parent=5 // pred_check_branch
      %279 = sbr.rel (%p277) target = $region40
    $region39: #{cross_entropy_loss.1} parent=5 // pred_region
      %s280 = ssub.s32 %s9, 2
      // Predicated region
      $region41: #{cross_entropy_loss.1} parent=39 // pred_check
        %p281 = pneg %p116
      $region42: #{cross_entropy_loss.1} parent=39 // pred_check_branch
        %283 = sbr.rel (%p281) target = $region44
      $region43: #{cross_entropy_loss.1} parent=39 // pred_region
        %s284 = smul.u32 2, %s15
        %p285 = scmp.lt.s32.totalorder %s284, 7
        %s286 = scalar_select %p285, %s284, 7
        %s287 = smul.addr %s286, 8
        %s288 = scalar_lea.vmem %s3, %s287
      $region44: #{cross_entropy_loss.1} parent=39 // pred_fallthru
        _
    $region40: #{cross_entropy_loss.1} parent=5 // pred_fallthru
      _
  $region6: #{cross_entropy_loss.1} parent=0 // loop_footer
    %s13 = sadd.s32 1, %s9
  $region7: #{cross_entropy_loss.1} parent=0 // loop_footer_branch
    %8 = sbr.rel target = $region3
  $region8: #{cross_entropy_loss.1} parent=0 // loop_exit
    _

</llo_original>
